<compile_context>
chip_gen: v6e
topology: v6e:2x2x1
jax: 0.10.0
libtpu: 0.0.40
codegen_flags: <defaults>
</compile_context>

<pallas_src>
import functools

import numpy as np
import jax
import jax.numpy as jnp
from jax import lax
from jax.experimental import pallas as pl
from jax.experimental.pallas import tpu as pltpu


def _reward_pairs_kernel(ids_ref, hid_ref, w_ref, out_ref, acc_ref, *, pad_id, seq_len, bt):
    """One grid step = `bt` (chosen, rejected) pairs x one hidden tile of width tH.

    ids_ref : (2*bt, 1, S)  int32   pair-interleaved token ids (even=chosen, odd=rejected)
    hid_ref : (2*bt, S, tH) bf16    pair-interleaved hidden-state tile
    w_ref   : (1, tH)       bf16    v_head weight tile
    out_ref : (bt, 1, 128)  f32     per-pair [loss, chosen_score, rejected_score, 0...]
    acc_ref : (2*bt, 1, S)  f32     VMEM accumulator for the v_head projection
    """
    S = seq_len
    k = pl.program_id(1)

    @pl.when(k == 0)
    def _init():
        acc_ref[...] = jnp.zeros_like(acc_ref)

    # --- partial v_head projection for this hidden tile (MXU, f32 accumulation) ---
    w = w_ref[...]                                   # (1, tH) bf16
    dn = (((1,), (1,)), ((), ()))                    # contract over the hidden dim
    for r in range(2 * bt):                          # static unroll, small bt
        h = hid_ref[r]                               # (S, tH) bf16
        part = lax.dot_general(w, h, dn, preferred_element_type=jnp.float32)  # (1, S) f32
        acc_ref[r] += part

    # --- epilogue: scans + pairwise loss, only once per pair group -----------------
    @pl.when(k == pl.num_programs(1) - 1)
    def _epilogue():
        idx = lax.broadcasted_iota(jnp.int32, (1, S), 1)
        lane = lax.broadcasted_iota(jnp.int32, (1, 128), 1)
        for p in range(bt):
            chosen_id = ids_ref[2 * p]               # (1, S) int32
            rejected_id = ids_ref[2 * p + 1]         # (1, S) int32
            chosen_reward = acc_ref[2 * p]           # (1, S) f32
            rejected_reward = acc_ref[2 * p + 1]     # (1, S) f32

            # c_ind: first PAD position in chosen ids, else seq_len
            c_ind = jnp.min(jnp.where(chosen_id == pad_id, idx, S), axis=1, keepdims=True)
            # r_ind (pad-based): first PAD position in rejected ids, else seq_len
            r_ind_pad = jnp.min(jnp.where(rejected_id == pad_id, idx, S), axis=1, keepdims=True)

            div_mask = chosen_id != rejected_id
            has_div = jnp.sum(div_mask.astype(jnp.int32), axis=1, keepdims=True) > 0
            first_div = jnp.min(jnp.where(div_mask, idx, S), axis=1, keepdims=True)

            end_ind = jnp.where(has_div, jnp.maximum(c_ind, r_ind_pad), S)
            div_ind = jnp.where(has_div, first_div, S - 1)
            r_ind = jnp.where(has_div, r_ind_pad, c_ind)

            # mean over [div_ind, end_ind) of -log(sigmoid(c - r)) == softplus(-(c - r))
            # (numerically stable: no inf when c - r is strongly negative)
            trunc_mask = (idx >= div_ind) & (idx < end_ind)
            diff = chosen_reward - rejected_reward
            neg_log_sig = jnp.maximum(-diff, 0.0) + jnp.log(1.0 + jnp.exp(-jnp.abs(diff)))
            cnt = jnp.sum(trunc_mask.astype(jnp.float32), axis=1, keepdims=True)
            loss_p = jnp.sum(jnp.where(trunc_mask, neg_log_sig, 0.0), axis=1,
                             keepdims=True) / jnp.maximum(cnt, 1.0)

            # end scores: chosen_reward[c_ind - 1], rejected_reward[r_ind - 1]
            # (degenerate c_ind == 0 would yield 0.0 instead of wrapping to -1; inputs
            #  satisfy the module's `assert divergence_ind > 0` precondition anyway)
            c_score = jnp.sum(jnp.where(idx == (c_ind - 1), chosen_reward, 0.0),
                              axis=1, keepdims=True)
            r_score = jnp.sum(jnp.where(idx == (r_ind - 1), rejected_reward, 0.0),
                              axis=1, keepdims=True)

            # lane-dense packed row: [loss, chosen_score, rejected_score, 0, ...]
            row = jnp.where(lane == 0, loss_p,
                  jnp.where(lane == 1, c_score,
                  jnp.where(lane == 2, r_score, 0.0)))
            out_ref[p] = row


def _largest_divisor_le(n, cap):
    for d in range(max(1, min(n, cap)), 0, -1):
        if n % d == 0:
            return d
    return 1


def _pick_hidden_tile(H):
    """tH: full H if small, else a multiple of 128 dividing H, capped at 512."""
    if H <= 512:
        return H
    for t in (512, 256, 128):
        if H % t == 0:
            return t
    return H


def _pick_pair_tile(bs, seq_len, tH, itemsize=2, budget_bytes=12 * 1024 * 1024):
    """bt: pairs per grid step s.t. double-buffered hidden tiles fit the VMEM budget."""
    per_pair = 2 * 2 * seq_len * tH * itemsize       # chosen+rejected rows x 2 buffers
    cap = max(1, budget_bytes // max(1, per_pair))
    return _largest_divisor_le(bs, min(8, cap))


def reward_model_forward(input_ids, emb_table, v_head_w, pad_id):
    """Returns (rm_loss, sft_loss, chosen_mean_scores, rejected_mean_scores)."""
    total_b, seq_len = input_ids.shape
    bs = total_b // 2
    H = emb_table.shape[1]

    # Pair-interleave rows (row 2p = chosen p, row 2p+1 = rejected p) BEFORE the gather
    # so the kernel needs a single ids stream and a single hidden stream per pair group.
    ids_pairs = jnp.stack([input_ids[:bs], input_ids[bs:]], axis=1) \
                   .reshape(2 * bs, seq_len).astype(jnp.int32)

    # Synthetic "transformer": bf16 embedding lookup (halves HBM traffic vs f32).
    emb_bf16 = emb_table.astype(jnp.bfloat16)
    w_bf16 = v_head_w.astype(jnp.bfloat16)
    hidden = emb_bf16[ids_pairs]                      # (2*bs, S, H) bf16
    ids3 = ids_pairs.reshape(2 * bs, 1, seq_len)      # (2*bs, 1, S) int32

    tH = _pick_hidden_tile(H)
    bt = _pick_pair_tile(bs, seq_len, tH)
    n_pair_blocks = bs // bt
    n_k_blocks = H // tH

    kernel = functools.partial(_reward_pairs_kernel, pad_id=pad_id, seq_len=seq_len, bt=bt)

    out = pl.pallas_call(
        kernel,
        out_shape=jax.ShapeDtypeStruct((bs, 1, 128), jnp.float32),
        grid_spec=pltpu.PrefetchScalarGridSpec(
            num_scalar_prefetch=0,
            grid=(n_pair_blocks, n_k_blocks),
            in_specs=[
                # ids: resident across the K axis (index_map independent of k)
                pl.BlockSpec((2 * bt, 1, seq_len), lambda i, k: (i, 0, 0)),
                # hidden: streamed over the K (hidden) axis in bf16 tiles
                pl.BlockSpec((2 * bt, seq_len, tH), lambda i, k: (i, 0, k)),
                # v_head weight tile: depends only on k -> resident across pair axis
                pl.BlockSpec((1, tH), lambda i, k: (0, k)),
            ],
            out_specs=pl.BlockSpec((bt, 1, 128), lambda i, k: (i, 0, 0)),
            scratch_shapes=[pltpu.VMEM((2 * bt, 1, seq_len), jnp.float32)],
        ),
        compiler_params=pltpu.CompilerParams(
            dimension_semantics=("parallel", "arbitrary"),
            # Tiles are sized (<= ~12 MiB double-buffered) to fit comfortably within
            # this scoped limit on v5e/v6e/v7x.
            vmem_limit_bytes=32 * 1024 * 1024,
        ),
    )(ids3, hidden, w_bf16)

    rm_loss = jnp.mean(out[:, 0, 0])
    chosen_mean_scores = out[:, 0, 1]
    rejected_mean_scores = out[:, 0, 2]
    sft_loss = jnp.float32(0.0)   # with_sft=False
    return rm_loss, sft_loss, chosen_mean_scores, rejected_mean_scores


def _numpy_reference(input_ids, emb_table, v_head_w, pad_id):
    ids = np.asarray(input_ids)
    hidden = np.asarray(emb_table)[ids].astype(np.float32)
    rewards = hidden @ np.asarray(v_head_w)[0]                # (2*bs, S)
    total_b, seq_len = ids.shape
    bs = total_b // 2
    c_scores, r_scores, loss = [], [], 0.0
    for i in range(bs):
        cid, rid = ids[i], ids[i + bs]
        cr, rr = rewards[i], rewards[i + bs]
        c_inds = np.nonzero(cid == pad_id)[0]
        c_ind = int(c_inds[0]) if len(c_inds) > 0 else seq_len
        div = np.nonzero(cid != rid)[0]
        if len(div) == 0:
            end_ind = seq_len
            div_ind = end_ind - 1
            r_ind = c_ind
        else:
            r_inds = np.nonzero(rid == pad_id)[0]
            r_ind = int(r_inds[0]) if len(r_inds) > 0 else seq_len
            end_ind = max(c_ind, r_ind)
            div_ind = int(div[0])
        ct, rt = cr[div_ind:end_ind], rr[div_ind:end_ind]
        c_scores.append(cr[c_ind - 1])
        r_scores.append(rr[r_ind - 1])
        loss += float(np.mean(-np.log(1.0 / (1.0 + np.exp(-(ct - rt))))))
    return loss / bs, np.array(c_scores), np.array(r_scores)


if __name__ == "__main__":
    bs, seq_len, hidden_size, vocab = 2, 8, 32, 50
    PAD_ID = 0

    key = jax.random.PRNGKey(0)
    k_ids, k_emb, k_w = jax.random.split(key, 3)

    # deterministic synthetic parameters (shapes from module __init__: v_head = Linear(hidden, 1, bias=False))
    emb_table = (jax.random.normal(k_emb, (vocab, hidden_size), dtype=jnp.float32) * 0.02)
    v_head_w = (jax.random.normal(k_w, (1, hidden_size), dtype=jnp.float32) * 0.02)

    # input_ids: [chosen (bs rows); rejected (bs rows)], shared BOS so divergence_ind > 0,
    # PAD tokens appended at the tail.
    input_ids = jax.random.randint(k_ids, (2 * bs, seq_len), 1, vocab, dtype=jnp.int32)
    input_ids = input_ids.at[:, 0].set(1)                       # same first token for all rows
    input_ids = input_ids.at[:bs, -2:].set(PAD_ID)              # chosen: 2 trailing PADs
    input_ids = input_ids.at[bs:, -1:].set(PAD_ID)              # rejected: 1 trailing PAD

    rm_loss, sft_loss, chosen_scores, rejected_scores = jax.block_until_ready(
        reward_model_forward(input_ids, emb_table, v_head_w, PAD_ID))

    # Reference uses the same bf16-rounded parameters the kernel streams.
    emb_ref = np.asarray(emb_table.astype(jnp.bfloat16).astype(jnp.float32))
    w_ref = np.asarray(v_head_w.astype(jnp.bfloat16).astype(jnp.float32))
    ref_loss, ref_c, ref_r = _numpy_reference(input_ids, emb_ref, w_ref, PAD_ID)

    assert np.allclose(float(rm_loss), ref_loss, rtol=1e-3, atol=1e-5), (float(rm_loss), ref_loss)
    assert np.allclose(np.asarray(chosen_scores), ref_c, rtol=1e-3, atol=1e-5)
    assert np.allclose(np.asarray(rejected_scores), ref_r, rtol=1e-3, atol=1e-5)

    print("KERNEL_OK")
</pallas_src>

<mosaic_0001>
module attributes {stable_mosaic.version = 11 : i64} {
  func.func @_reward_pairs_kernel(%arg0: i32, %arg1: i32, %arg2: memref<4x1x8xi32, #tpu.memory_space<vmem>>, %arg3: memref<4x8x32xbf16, #tpu.memory_space<vmem>>, %arg4: memref<1x32xbf16, #tpu.memory_space<vmem>>, %arg5: memref<2x1x128xf32, #tpu.memory_space<vmem>>, %arg6: memref<4x1x8xf32, #tpu.memory_space<vmem>>) attributes {dimension_semantics = [#tpu.dimension_semantics<parallel>, #tpu.dimension_semantics<arbitrary>], iteration_bounds = array<i64: 1, 1>, scalar_prefetch = 0 : i64, scratch_operands = 1 : i64, tpu.core_type = #tpu.core_type<tc>, window_params = [{transform_indices = @transform_0, window_bounds = array<i64: 4, 1, 8>}, {transform_indices = @transform_1, window_bounds = array<i64: 4, 8, 32>}, {transform_indices = @transform_2, window_bounds = array<i64: 1, 32>}, {transform_indices = @transform_3, window_bounds = array<i64: 2, 1, 128>}]} {
    %c0_i32 = arith.constant 0 : i32
    %0 = arith.cmpi eq, %arg1, %c0_i32 : i32
    %1 = arith.extui %0 : i1 to i32
    %c0_i32_0 = arith.constant 0 : i32
    %2 = arith.cmpi ne, %1, %c0_i32_0 : i32
    scf.if %2 {
      %cst_40 = arith.constant 0.000000e+00 : f32
      %43 = vector.broadcast %cst_40 : f32 to vector<4x1x8xf32>
      %c0_41 = arith.constant 0 : index
      %c0_42 = arith.constant 0 : index
      %c0_43 = arith.constant 0 : index
      %44 = vector.load %arg6[%c0_41, %c0_42, %c0_43] : memref<4x1x8xf32, #tpu.memory_space<vmem>>, vector<4x1x8xf32>
      tpu.vector_store %arg6[%c0_41, %c0_42, %c0_43], %43 {strides = array<i32>} : memref<4x1x8xf32, #tpu.memory_space<vmem>>, vector<4x1x8xf32>,
    } else {
    }
    %c0 = arith.constant 0 : index
    %c0_1 = arith.constant 0 : index
    %3 = vector.load %arg4[%c0, %c0_1] : memref<1x32xbf16, #tpu.memory_space<vmem>>, vector<1x32xbf16>
    %c0_2 = arith.constant 0 : index
    %c0_3 = arith.constant 0 : index
    %c0_4 = arith.constant 0 : index
    %4 = vector.load %arg3[%c0_2, %c0_3, %c0_4] : memref<4x8x32xbf16, #tpu.memory_space<vmem>>, vector<1x8x32xbf16>
    %5 = vector.shape_cast %4 : vector<1x8x32xbf16> to vector<8x32xbf16>
    %cst = arith.constant dense<0.000000e+00> : vector<1x8xf32>
    %6 = tpu.matmul %3, %5, %cst {dimension_numbers = #tpu.dot_dimension_numbers<[1], [1], [0], [0], [0, 0, 1, 0], [], []>} : vector<1x32xbf16>, vector<8x32xbf16>, vector<1x8xf32> -> vector<1x8xf32>
    %c0_5 = arith.constant 0 : index
    %c0_6 = arith.constant 0 : index
    %c0_7 = arith.constant 0 : index
    %7 = vector.load %arg6[%c0_5, %c0_6, %c0_7] : memref<4x1x8xf32, #tpu.memory_space<vmem>>, vector<1x1x8xf32>
    %8 = vector.shape_cast %7 : vector<1x1x8xf32> to vector<1x8xf32>
    %9 = arith.addf %8, %6 : vector<1x8xf32>
    %c0_8 = arith.constant 0 : index
    %c0_9 = arith.constant 0 : index
    %c0_10 = arith.constant 0 : index
    %10 = vector.load %arg6[%c0_8, %c0_9, %c0_10] : memref<4x1x8xf32, #tpu.memory_space<vmem>>, vector<1x1x8xf32>
    %11 = vector.shape_cast %10 : vector<1x1x8xf32> to vector<1x8xf32>
    %12 = vector.shape_cast %9 : vector<1x8xf32> to vector<1x1x8xf32>
    tpu.vector_store %arg6[%c0_8, %c0_9, %c0_10], %12 {strides = array<i32>} : memref<4x1x8xf32, #tpu.memory_space<vmem>>, vector<1x1x8xf32>,
    %c1 = arith.constant 1 : index
    %c0_11 = arith.constant 0 : index
    %c0_12 = arith.constant 0 : index
    %13 = vector.load %arg3[%c1, %c0_11, %c0_12] : memref<4x8x32xbf16, #tpu.memory_space<vmem>>, vector<1x8x32xbf16>
    %14 = vector.shape_cast %13 : vector<1x8x32xbf16> to vector<8x32xbf16>
    %cst_13 = arith.constant dense<0.000000e+00> : vector<1x8xf32>
    %15 = tpu.matmul %3, %14, %cst_13 {dimension_numbers = #tpu.dot_dimension_numbers<[1], [1], [0], [0], [0, 0, 1, 0], [], []>} : vector<1x32xbf16>, vector<8x32xbf16>, vector<1x8xf32> -> vector<1x8xf32>
    %c1_14 = arith.constant 1 : index
    %c0_15 = arith.constant 0 : index
    %c0_16 = arith.constant 0 : index
    %16 = vector.load %arg6[%c1_14, %c0_15, %c0_16] : memref<4x1x8xf32, #tpu.memory_space<vmem>>, vector<1x1x8xf32>
    %17 = vector.shape_cast %16 : vector<1x1x8xf32> to vector<1x8xf32>
    %18 = arith.addf %17, %15 : vector<1x8xf32>
    %c1_17 = arith.constant 1 : index
    %c0_18 = arith.constant 0 : index
    %c0_19 = arith.constant 0 : index
    %19 = vector.load %arg6[%c1_17, %c0_18, %c0_19] : memref<4x1x8xf32, #tpu.memory_space<vmem>>, vector<1x1x8xf32>
    %20 = vector.shape_cast %19 : vector<1x1x8xf32> to vector<1x8xf32>
    %21 = vector.shape_cast %18 : vector<1x8xf32> to vector<1x1x8xf32>
    tpu.vector_store %arg6[%c1_17, %c0_18, %c0_19], %21 {strides = array<i32>} : memref<4x1x8xf32, #tpu.memory_space<vmem>>, vector<1x1x8xf32>,
    %c2 = arith.constant 2 : index
    %c0_20 = arith.constant 0 : index
    %c0_21 = arith.constant 0 : index
    %22 = vector.load %arg3[%c2, %c0_20, %c0_21] : memref<4x8x32xbf16, #tpu.memory_space<vmem>>, vector<1x8x32xbf16>
    %23 = vector.shape_cast %22 : vector<1x8x32xbf16> to vector<8x32xbf16>
    %cst_22 = arith.constant dense<0.000000e+00> : vector<1x8xf32>
    %24 = tpu.matmul %3, %23, %cst_22 {dimension_numbers = #tpu.dot_dimension_numbers<[1], [1], [0], [0], [0, 0, 1, 0], [], []>} : vector<1x32xbf16>, vector<8x32xbf16>, vector<1x8xf32> -> vector<1x8xf32>
    %c2_23 = arith.constant 2 : index
    %c0_24 = arith.constant 0 : index
    %c0_25 = arith.constant 0 : index
    %25 = vector.load %arg6[%c2_23, %c0_24, %c0_25] : memref<4x1x8xf32, #tpu.memory_space<vmem>>, vector<1x1x8xf32>
    %26 = vector.shape_cast %25 : vector<1x1x8xf32> to vector<1x8xf32>
    %27 = arith.addf %26, %24 : vector<1x8xf32>
    %c2_26 = arith.constant 2 : index
    %c0_27 = arith.constant 0 : index
    %c0_28 = arith.constant 0 : index
    %28 = vector.load %arg6[%c2_26, %c0_27, %c0_28] : memref<4x1x8xf32, #tpu.memory_space<vmem>>, vector<1x1x8xf32>
    %29 = vector.shape_cast %28 : vector<1x1x8xf32> to vector<1x8xf32>
    %30 = vector.shape_cast %27 : vector<1x8xf32> to vector<1x1x8xf32>
    tpu.vector_store %arg6[%c2_26, %c0_27, %c0_28], %30 {strides = array<i32>} : memref<4x1x8xf32, #tpu.memory_space<vmem>>, vector<1x1x8xf32>,
    %c3 = arith.constant 3 : index
    %c0_29 = arith.constant 0 : index
    %c0_30 = arith.constant 0 : index
    %31 = vector.load %arg3[%c3, %c0_29, %c0_30] : memref<4x8x32xbf16, #tpu.memory_space<vmem>>, vector<1x8x32xbf16>
    %32 = vector.shape_cast %31 : vector<1x8x32xbf16> to vector<8x32xbf16>
    %cst_31 = arith.constant dense<0.000000e+00> : vector<1x8xf32>
    %33 = tpu.matmul %3, %32, %cst_31 {dimension_numbers = #tpu.dot_dimension_numbers<[1], [1], [0], [0], [0, 0, 1, 0], [], []>} : vector<1x32xbf16>, vector<8x32xbf16>, vector<1x8xf32> -> vector<1x8xf32>
    %c3_32 = arith.constant 3 : index
    %c0_33 = arith.constant 0 : index
    %c0_34 = arith.constant 0 : index
    %34 = vector.load %arg6[%c3_32, %c0_33, %c0_34] : memref<4x1x8xf32, #tpu.memory_space<vmem>>, vector<1x1x8xf32>
    %35 = vector.shape_cast %34 : vector<1x1x8xf32> to vector<1x8xf32>
    %36 = arith.addf %35, %33 : vector<1x8xf32>
    %c3_35 = arith.constant 3 : index
    %c0_36 = arith.constant 0 : index
    %c0_37 = arith.constant 0 : index
    %37 = vector.load %arg6[%c3_35, %c0_36, %c0_37] : memref<4x1x8xf32, #tpu.memory_space<vmem>>, vector<1x1x8xf32>
    %38 = vector.shape_cast %37 : vector<1x1x8xf32> to vector<1x8xf32>
    %39 = vector.shape_cast %36 : vector<1x8xf32> to vector<1x1x8xf32>
    tpu.vector_store %arg6[%c3_35, %c0_36, %c0_37], %39 {strides = array<i32>} : memref<4x1x8xf32, #tpu.memory_space<vmem>>, vector<1x1x8xf32>,
    %c0_i32_38 = arith.constant 0 : i32
    %40 = arith.cmpi eq, %arg1, %c0_i32_38 : i32
    %41 = arith.extui %40 : i1 to i32
    %c0_i32_39 = arith.constant 0 : i32
    %42 = arith.cmpi ne, %41, %c0_i32_39 : i32
    scf.if %42 {
      %43 = tpu.iota {dimensions = array<i32: 1>} : vector<1x8xi32>
      %44 = tpu.iota {dimensions = array<i32: 1>} : vector<1x128xi32>
      %c0_40 = arith.constant 0 : index
      %c0_41 = arith.constant 0 : index
      %c0_42 = arith.constant 0 : index
      %45 = vector.load %arg2[%c0_40, %c0_41, %c0_42] : memref<4x1x8xi32, #tpu.memory_space<vmem>>, vector<1x1x8xi32>
      %46 = vector.shape_cast %45 : vector<1x1x8xi32> to vector<1x8xi32>
      %c1_43 = arith.constant 1 : index
      %c0_44 = arith.constant 0 : index
      %c0_45 = arith.constant 0 : index
      %47 = vector.load %arg2[%c1_43, %c0_44, %c0_45] : memref<4x1x8xi32, #tpu.memory_space<vmem>>, vector<1x1x8xi32>
      %48 = vector.shape_cast %47 : vector<1x1x8xi32> to vector<1x8xi32>
      %c0_46 = arith.constant 0 : index
      %c0_47 = arith.constant 0 : index
      %c0_48 = arith.constant 0 : index
      %49 = vector.load %arg6[%c0_46, %c0_47, %c0_48] : memref<4x1x8xf32, #tpu.memory_space<vmem>>, vector<1x1x8xf32>
      %50 = vector.shape_cast %49 : vector<1x1x8xf32> to vector<1x8xf32>
      %c1_49 = arith.constant 1 : index
      %c0_50 = arith.constant 0 : index
      %c0_51 = arith.constant 0 : index
      %51 = vector.load %arg6[%c1_49, %c0_50, %c0_51] : memref<4x1x8xf32, #tpu.memory_space<vmem>>, vector<1x1x8xf32>
      %52 = vector.shape_cast %51 : vector<1x1x8xf32> to vector<1x8xf32>
      %c0_i32_52 = arith.constant 0 : i32
      %53 = vector.broadcast %c0_i32_52 : i32 to vector<1x8xi32>
      %54 = arith.cmpi eq, %46, %53 : vector<1x8xi32>
      %c8_i32 = arith.constant 8 : i32
      %55 = vector.broadcast %c8_i32 : i32 to vector<1x8xi32>
      %56 = arith.select %54, %43, %55 : vector<1x8xi1>, vector<1x8xi32>
      %cst_53 = arith.constant dense<2147483647> : vector<1xi32>
      %57 = vector.multi_reduction <minsi>, %56, %cst_53 [1] : vector<1x8xi32> to vector<1xi32>
      %58 = vector.shape_cast %57 : vector<1xi32> to vector<1x1xi32>
      %c0_i32_54 = arith.constant 0 : i32
      %59 = vector.broadcast %c0_i32_54 : i32 to vector<1x8xi32>
      %60 = arith.cmpi eq, %48, %59 : vector<1x8xi32>
      %c8_i32_55 = arith.constant 8 : i32
      %61 = vector.broadcast %c8_i32_55 : i32 to vector<1x8xi32>
      %62 = arith.select %60, %43, %61 : vector<1x8xi1>, vector<1x8xi32>
      %cst_56 = arith.constant dense<2147483647> : vector<1xi32>
      %63 = vector.multi_reduction <minsi>, %62, %cst_56 [1] : vector<1x8xi32> to vector<1xi32>
      %64 = vector.shape_cast %63 : vector<1xi32> to vector<1x1xi32>
      %65 = arith.cmpi ne, %46, %48 : vector<1x8xi32>
      %66 = arith.extui %65 : vector<1x8xi1> to vector<1x8xi32>
      %cst_57 = arith.constant dense<0> : vector<1xi32>
      %67 = vector.multi_reduction <add>, %66, %cst_57 [1] : vector<1x8xi32> to vector<1xi32>
      %68 = vector.shape_cast %67 : vector<1xi32> to vector<1x1xi32>
      %c0_i32_58 = arith.constant 0 : i32
      %69 = vector.broadcast %c0_i32_58 : i32 to vector<1x1xi32>
      %70 = arith.cmpi sgt, %68, %69 : vector<1x1xi32>
      %c8_i32_59 = arith.constant 8 : i32
      %71 = vector.broadcast %c8_i32_59 : i32 to vector<1x8xi32>
      %72 = arith.select %65, %43, %71 : vector<1x8xi1>, vector<1x8xi32>
      %cst_60 = arith.constant dense<2147483647> : vector<1xi32>
      %73 = vector.multi_reduction <minsi>, %72, %cst_60 [1] : vector<1x8xi32> to vector<1xi32>
      %74 = vector.shape_cast %73 : vector<1xi32> to vector<1x1xi32>
      %75 = arith.maxsi %58, %64 : vector<1x1xi32>
      %c8_i32_61 = arith.constant 8 : i32
      %76 = vector.broadcast %c8_i32_61 : i32 to vector<1x1xi32>
      %77 = arith.select %70, %75, %76 : vector<1x1xi1>, vector<1x1xi32>
      %c7_i32 = arith.constant 7 : i32
      %78 = vector.broadcast %c7_i32 : i32 to vector<1x1xi32>
      %79 = arith.select %70, %74, %78 : vector<1x1xi1>, vector<1x1xi32>
      %80 = arith.select %70, %64, %58 : vector<1x1xi1>, vector<1x1xi32>
      %81 = vector.broadcast %79 : vector<1x1xi32> to vector<1x8xi32>
      %82 = arith.cmpi sge, %43, %81 : vector<1x8xi32>
      %83 = vector.broadcast %77 : vector<1x1xi32> to vector<1x8xi32>
      %84 = arith.cmpi slt, %43, %83 : vector<1x8xi32>
      %85 = arith.andi %82, %84 : vector<1x8xi1>
      %86 = arith.subf %50, %52 : vector<1x8xf32>
      %cst_62 = arith.constant 0.000000e+00 : f32
      %87 = vector.broadcast %cst_62 : f32 to vector<1x8xf32>
      %88 = arith.subf %87, %86 : vector<1x8xf32>
      %cst_63 = arith.constant 0.000000e+00 : f32
      %89 = vector.broadcast %cst_63 : f32 to vector<1x8xf32>
      %90 = arith.maximumf %88, %89 : vector<1x8xf32>
      %91 = math.absf %86 : vector<1x8xf32>
      %cst_64 = arith.constant 0.000000e+00 : f32
      %92 = vector.broadcast %cst_64 : f32 to vector<1x8xf32>
      %93 = arith.subf %92, %91 : vector<1x8xf32>
      %94 = math.exp %93 : vector<1x8xf32>
      %cst_65 = arith.constant 1.000000e+00 : f32
      %95 = vector.broadcast %cst_65 : f32 to vector<1x8xf32>
      %96 = arith.addf %95, %94 : vector<1x8xf32>
      %97 = math.log %96 : vector<1x8xf32>
      %98 = arith.addf %90, %97 : vector<1x8xf32>
      %99 = arith.extui %85 : vector<1x8xi1> to vector<1x8xi32>
      %100 = arith.sitofp %99 : vector<1x8xi32> to vector<1x8xf32>
      %cst_66 = arith.constant dense<0.000000e+00> : vector<1xf32>
      %101 = vector.multi_reduction <add>, %100, %cst_66 [1] : vector<1x8xf32> to vector<1xf32>
      %102 = vector.shape_cast %101 : vector<1xf32> to vector<1x1xf32>
      %cst_67 = arith.constant 0.000000e+00 : f32
      %103 = vector.broadcast %cst_67 : f32 to vector<1x8xf32>
      %104 = arith.select %85, %98, %103 : vector<1x8xi1>, vector<1x8xf32>
      %cst_68 = arith.constant dense<0.000000e+00> : vector<1xf32>
      %105 = vector.multi_reduction <add>, %104, %cst_68 [1] : vector<1x8xf32> to vector<1xf32>
      %106 = vector.shape_cast %105 : vector<1xf32> to vector<1x1xf32>
      %cst_69 = arith.constant 1.000000e+00 : f32
      %107 = vector.broadcast %cst_69 : f32 to vector<1x1xf32>
      %108 = arith.maximumf %102, %107 : vector<1x1xf32>
      %109 = arith.divf %106, %108 : vector<1x1xf32>
      %c1_i32 = arith.constant 1 : i32
      %110 = vector.broadcast %c1_i32 : i32 to vector<1x1xi32>
      %111 = arith.subi %58, %110 : vector<1x1xi32>
      %112 = vector.broadcast %111 : vector<1x1xi32> to vector<1x8xi32>
      %113 = arith.cmpi eq, %43, %112 : vector<1x8xi32>
      %cst_70 = arith.constant 0.000000e+00 : f32
      %114 = vector.broadcast %cst_70 : f32 to vector<1x8xf32>
      %115 = arith.select %113, %50, %114 : vector<1x8xi1>, vector<1x8xf32>
      %cst_71 = arith.constant dense<0.000000e+00> : vector<1xf32>
      %116 = vector.multi_reduction <add>, %115, %cst_71 [1] : vector<1x8xf32> to vector<1xf32>
      %117 = vector.shape_cast %116 : vector<1xf32> to vector<1x1xf32>
      %c1_i32_72 = arith.constant 1 : i32
      %118 = vector.broadcast %c1_i32_72 : i32 to vector<1x1xi32>
      %119 = arith.subi %80, %118 : vector<1x1xi32>
      %120 = vector.broadcast %119 : vector<1x1xi32> to vector<1x8xi32>
      %121 = arith.cmpi eq, %43, %120 : vector<1x8xi32>
      %cst_73 = arith.constant 0.000000e+00 : f32
      %122 = vector.broadcast %cst_73 : f32 to vector<1x8xf32>
      %123 = arith.select %121, %52, %122 : vector<1x8xi1>, vector<1x8xf32>
      %cst_74 = arith.constant dense<0.000000e+00> : vector<1xf32>
      %124 = vector.multi_reduction <add>, %123, %cst_74 [1] : vector<1x8xf32> to vector<1xf32>
      %125 = vector.shape_cast %124 : vector<1xf32> to vector<1x1xf32>
      %c0_i32_75 = arith.constant 0 : i32
      %126 = vector.broadcast %c0_i32_75 : i32 to vector<1x128xi32>
      %127 = arith.cmpi eq, %44, %126 : vector<1x128xi32>
      %c1_i32_76 = arith.constant 1 : i32
      %128 = vector.broadcast %c1_i32_76 : i32 to vector<1x128xi32>
      %129 = arith.cmpi eq, %44, %128 : vector<1x128xi32>
      %c2_i32 = arith.constant 2 : i32
      %130 = vector.broadcast %c2_i32 : i32 to vector<1x128xi32>
      %131 = arith.cmpi eq, %44, %130 : vector<1x128xi32>
      %cst_77 = arith.constant 0.000000e+00 : f32
      %132 = vector.shape_cast %125 : vector<1x1xf32> to vector<1x1xf32>
      %133 = vector.broadcast %132 : vector<1x1xf32> to vector<1x128xf32>
      %134 = vector.broadcast %cst_77 : f32 to vector<1x128xf32>
      %135 = arith.select %131, %133, %134 : vector<1x128xi1>, vector<1x128xf32>
      %136 = vector.shape_cast %117 : vector<1x1xf32> to vector<1x1xf32>
      %137 = vector.broadcast %136 : vector<1x1xf32> to vector<1x128xf32>
      %138 = arith.select %129, %137, %135 : vector<1x128xi1>, vector<1x128xf32>
      %139 = vector.shape_cast %109 : vector<1x1xf32> to vector<1x1xf32>
      %140 = vector.broadcast %139 : vector<1x1xf32> to vector<1x128xf32>
      %141 = arith.select %127, %140, %138 : vector<1x128xi1>, vector<1x128xf32>
      %c0_78 = arith.constant 0 : index
      %c0_79 = arith.constant 0 : index
      %c0_80 = arith.constant 0 : index
      %142 = vector.load %arg5[%c0_78, %c0_79, %c0_80] : memref<2x1x128xf32, #tpu.memory_space<vmem>>, vector<1x1x128xf32>
      %143 = vector.shape_cast %142 : vector<1x1x128xf32> to vector<1x128xf32>
      %144 = vector.shape_cast %141 : vector<1x128xf32> to vector<1x1x128xf32>
      tpu.vector_store %arg5[%c0_78, %c0_79, %c0_80], %144 {strides = array<i32>} : memref<2x1x128xf32, #tpu.memory_space<vmem>>, vector<1x1x128xf32>,
      %c2_81 = arith.constant 2 : index
      %c0_82 = arith.constant 0 : index
      %c0_83 = arith.constant 0 : index
      %145 = vector.load %arg2[%c2_81, %c0_82, %c0_83] : memref<4x1x8xi32, #tpu.memory_space<vmem>>, vector<1x1x8xi32>
      %146 = vector.shape_cast %145 : vector<1x1x8xi32> to vector<1x8xi32>
      %c3_84 = arith.constant 3 : index
      %c0_85 = arith.constant 0 : index
      %c0_86 = arith.constant 0 : index
      %147 = vector.load %arg2[%c3_84, %c0_85, %c0_86] : memref<4x1x8xi32, #tpu.memory_space<vmem>>, vector<1x1x8xi32>
      %148 = vector.shape_cast %147 : vector<1x1x8xi32> to vector<1x8xi32>
      %c2_87 = arith.constant 2 : index
      %c0_88 = arith.constant 0 : index
      %c0_89 = arith.constant 0 : index
      %149 = vector.load %arg6[%c2_87, %c0_88, %c0_89] : memref<4x1x8xf32, #tpu.memory_space<vmem>>, vector<1x1x8xf32>
      %150 = vector.shape_cast %149 : vector<1x1x8xf32> to vector<1x8xf32>
      %c3_90 = arith.constant 3 : index
      %c0_91 = arith.constant 0 : index
      %c0_92 = arith.constant 0 : index
      %151 = vector.load %arg6[%c3_90, %c0_91, %c0_92] : memref<4x1x8xf32, #tpu.memory_space<vmem>>, vector<1x1x8xf32>
      %152 = vector.shape_cast %151 : vector<1x1x8xf32> to vector<1x8xf32>
      %c0_i32_93 = arith.constant 0 : i32
      %153 = vector.broadcast %c0_i32_93 : i32 to vector<1x8xi32>
      %154 = arith.cmpi eq, %146, %153 : vector<1x8xi32>
      %c8_i32_94 = arith.constant 8 : i32
      %155 = vector.broadcast %c8_i32_94 : i32 to vector<1x8xi32>
      %156 = arith.select %154, %43, %155 : vector<1x8xi1>, vector<1x8xi32>
      %cst_95 = arith.constant dense<2147483647> : vector<1xi32>
      %157 = vector.multi_reduction <minsi>, %156, %cst_95 [1] : vector<1x8xi32> to vector<1xi32>
      %158 = vector.shape_cast %157 : vector<1xi32> to vector<1x1xi32>
      %c0_i32_96 = arith.constant 0 : i32
      %159 = vector.broadcast %c0_i32_96 : i32 to vector<1x8xi32>
      %160 = arith.cmpi eq, %148, %159 : vector<1x8xi32>
      %c8_i32_97 = arith.constant 8 : i32
      %161 = vector.broadcast %c8_i32_97 : i32 to vector<1x8xi32>
      %162 = arith.select %160, %43, %161 : vector<1x8xi1>, vector<1x8xi32>
      %cst_98 = arith.constant dense<2147483647> : vector<1xi32>
      %163 = vector.multi_reduction <minsi>, %162, %cst_98 [1] : vector<1x8xi32> to vector<1xi32>
      %164 = vector.shape_cast %163 : vector<1xi32> to vector<1x1xi32>
      %165 = arith.cmpi ne, %146, %148 : vector<1x8xi32>
      %166 = arith.extui %165 : vector<1x8xi1> to vector<1x8xi32>
      %cst_99 = arith.constant dense<0> : vector<1xi32>
      %167 = vector.multi_reduction <add>, %166, %cst_99 [1] : vector<1x8xi32> to vector<1xi32>
      %168 = vector.shape_cast %167 : vector<1xi32> to vector<1x1xi32>
      %c0_i32_100 = arith.constant 0 : i32
      %169 = vector.broadcast %c0_i32_100 : i32 to vector<1x1xi32>
      %170 = arith.cmpi sgt, %168, %169 : vector<1x1xi32>
      %c8_i32_101 = arith.constant 8 : i32
      %171 = vector.broadcast %c8_i32_101 : i32 to vector<1x8xi32>
      %172 = arith.select %165, %43, %171 : vector<1x8xi1>, vector<1x8xi32>
      %cst_102 = arith.constant dense<2147483647> : vector<1xi32>
      %173 = vector.multi_reduction <minsi>, %172, %cst_102 [1] : vector<1x8xi32> to vector<1xi32>
      %174 = vector.shape_cast %173 : vector<1xi32> to vector<1x1xi32>
      %175 = arith.maxsi %158, %164 : vector<1x1xi32>
      %c8_i32_103 = arith.constant 8 : i32
      %176 = vector.broadcast %c8_i32_103 : i32 to vector<1x1xi32>
      %177 = arith.select %170, %175, %176 : vector<1x1xi1>, vector<1x1xi32>
      %c7_i32_104 = arith.constant 7 : i32
      %178 = vector.broadcast %c7_i32_104 : i32 to vector<1x1xi32>
      %179 = arith.select %170, %174, %178 : vector<1x1xi1>, vector<1x1xi32>
      %180 = arith.select %170, %164, %158 : vector<1x1xi1>, vector<1x1xi32>
      %181 = vector.broadcast %179 : vector<1x1xi32> to vector<1x8xi32>
      %182 = arith.cmpi sge, %43, %181 : vector<1x8xi32>
      %183 = vector.broadcast %177 : vector<1x1xi32> to vector<1x8xi32>
      %184 = arith.cmpi slt, %43, %183 : vector<1x8xi32>
      %185 = arith.andi %182, %184 : vector<1x8xi1>
      %186 = arith.subf %150, %152 : vector<1x8xf32>
      %cst_105 = arith.constant 0.000000e+00 : f32
      %187 = vector.broadcast %cst_105 : f32 to vector<1x8xf32>
      %188 = arith.subf %187, %186 : vector<1x8xf32>
      %cst_106 = arith.constant 0.000000e+00 : f32
      %189 = vector.broadcast %cst_106 : f32 to vector<1x8xf32>
      %190 = arith.maximumf %188, %189 : vector<1x8xf32>
      %191 = math.absf %186 : vector<1x8xf32>
      %cst_107 = arith.constant 0.000000e+00 : f32
      %192 = vector.broadcast %cst_107 : f32 to vector<1x8xf32>
      %193 = arith.subf %192, %191 : vector<1x8xf32>
      %194 = math.exp %193 : vector<1x8xf32>
      %cst_108 = arith.constant 1.000000e+00 : f32
      %195 = vector.broadcast %cst_108 : f32 to vector<1x8xf32>
      %196 = arith.addf %195, %194 : vector<1x8xf32>
      %197 = math.log %196 : vector<1x8xf32>
      %198 = arith.addf %190, %197 : vector<1x8xf32>
      %199 = arith.extui %185 : vector<1x8xi1> to vector<1x8xi32>
      %200 = arith.sitofp %199 : vector<1x8xi32> to vector<1x8xf32>
      %cst_109 = arith.constant dense<0.000000e+00> : vector<1xf32>
      %201 = vector.multi_reduction <add>, %200, %cst_109 [1] : vector<1x8xf32> to vector<1xf32>
      %202 = vector.shape_cast %201 : vector<1xf32> to vector<1x1xf32>
      %cst_110 = arith.constant 0.000000e+00 : f32
      %203 = vector.broadcast %cst_110 : f32 to vector<1x8xf32>
      %204 = arith.select %185, %198, %203 : vector<1x8xi1>, vector<1x8xf32>
      %cst_111 = arith.constant dense<0.000000e+00> : vector<1xf32>
      %205 = vector.multi_reduction <add>, %204, %cst_111 [1] : vector<1x8xf32> to vector<1xf32>
      %206 = vector.shape_cast %205 : vector<1xf32> to vector<1x1xf32>
      %cst_112 = arith.constant 1.000000e+00 : f32
      %207 = vector.broadcast %cst_112 : f32 to vector<1x1xf32>
      %208 = arith.maximumf %202, %207 : vector<1x1xf32>
      %209 = arith.divf %206, %208 : vector<1x1xf32>
      %c1_i32_113 = arith.constant 1 : i32
      %210 = vector.broadcast %c1_i32_113 : i32 to vector<1x1xi32>
      %211 = arith.subi %158, %210 : vector<1x1xi32>
      %212 = vector.broadcast %211 : vector<1x1xi32> to vector<1x8xi32>
      %213 = arith.cmpi eq, %43, %212 : vector<1x8xi32>
      %cst_114 = arith.constant 0.000000e+00 : f32
      %214 = vector.broadcast %cst_114 : f32 to vector<1x8xf32>
      %215 = arith.select %213, %150, %214 : vector<1x8xi1>, vector<1x8xf32>
      %cst_115 = arith.constant dense<0.000000e+00> : vector<1xf32>
      %216 = vector.multi_reduction <add>, %215, %cst_115 [1] : vector<1x8xf32> to vector<1xf32>
      %217 = vector.shape_cast %216 : vector<1xf32> to vector<1x1xf32>
      %c1_i32_116 = arith.constant 1 : i32
      %218 = vector.broadcast %c1_i32_116 : i32 to vector<1x1xi32>
      %219 = arith.subi %180, %218 : vector<1x1xi32>
      %220 = vector.broadcast %219 : vector<1x1xi32> to vector<1x8xi32>
      %221 = arith.cmpi eq, %43, %220 : vector<1x8xi32>
      %cst_117 = arith.constant 0.000000e+00 : f32
      %222 = vector.broadcast %cst_117 : f32 to vector<1x8xf32>
      %223 = arith.select %221, %152, %222 : vector<1x8xi1>, vector<1x8xf32>
      %cst_118 = arith.constant dense<0.000000e+00> : vector<1xf32>
      %224 = vector.multi_reduction <add>, %223, %cst_118 [1] : vector<1x8xf32> to vector<1xf32>
      %225 = vector.shape_cast %224 : vector<1xf32> to vector<1x1xf32>
      %c0_i32_119 = arith.constant 0 : i32
      %226 = vector.broadcast %c0_i32_119 : i32 to vector<1x128xi32>
      %227 = arith.cmpi eq, %44, %226 : vector<1x128xi32>
      %c1_i32_120 = arith.constant 1 : i32
      %228 = vector.broadcast %c1_i32_120 : i32 to vector<1x128xi32>
      %229 = arith.cmpi eq, %44, %228 : vector<1x128xi32>
      %c2_i32_121 = arith.constant 2 : i32
      %230 = vector.broadcast %c2_i32_121 : i32 to vector<1x128xi32>
      %231 = arith.cmpi eq, %44, %230 : vector<1x128xi32>
      %cst_122 = arith.constant 0.000000e+00 : f32
      %232 = vector.shape_cast %225 : vector<1x1xf32> to vector<1x1xf32>
      %233 = vector.broadcast %232 : vector<1x1xf32> to vector<1x128xf32>
      %234 = vector.broadcast %cst_122 : f32 to vector<1x128xf32>
      %235 = arith.select %231, %233, %234 : vector<1x128xi1>, vector<1x128xf32>
      %236 = vector.shape_cast %217 : vector<1x1xf32> to vector<1x1xf32>
      %237 = vector.broadcast %236 : vector<1x1xf32> to vector<1x128xf32>
      %238 = arith.select %229, %237, %235 : vector<1x128xi1>, vector<1x128xf32>
      %239 = vector.shape_cast %209 : vector<1x1xf32> to vector<1x1xf32>
      %240 = vector.broadcast %239 : vector<1x1xf32> to vector<1x128xf32>
      %241 = arith.select %227, %240, %238 : vector<1x128xi1>, vector<1x128xf32>
      %c1_123 = arith.constant 1 : index
      %c0_124 = arith.constant 0 : index
      %c0_125 = arith.constant 0 : index
      %242 = vector.load %arg5[%c1_123, %c0_124, %c0_125] : memref<2x1x128xf32, #tpu.memory_space<vmem>>, vector<1x1x128xf32>
      %243 = vector.shape_cast %242 : vector<1x1x128xf32> to vector<1x128xf32>
      %244 = vector.shape_cast %241 : vector<1x128xf32> to vector<1x1x128xf32>
      tpu.vector_store %arg5[%c1_123, %c0_124, %c0_125], %244 {strides = array<i32>} : memref<2x1x128xf32, #tpu.memory_space<vmem>>, vector<1x1x128xf32>,
    } else {
    }
    return
  }
  func.func @transform_0(%arg0: i32, %arg1: i32) -> (i32, i32, i32) {
    %c0_i32 = arith.constant 0 : i32
    %c0_i32_0 = arith.constant 0 : i32
    %c0_i32_1 = arith.constant 0 : i32
    return %arg0, %c0_i32, %c0_i32_0 : i32, i32, i32
  }
  func.func @transform_1(%arg0: i32, %arg1: i32) -> (i32, i32, i32) {
    %c0_i32 = arith.constant 0 : i32
    %c0_i32_0 = arith.constant 0 : i32
    return %arg0, %c0_i32, %arg1 : i32, i32, i32
  }
  func.func @transform_2(%arg0: i32, %arg1: i32) -> (i32, i32) {
    %c0_i32 = arith.constant 0 : i32
    %c0_i32_0 = arith.constant 0 : i32
    return %c0_i32, %arg1 : i32, i32
  }
  func.func @transform_3(%arg0: i32, %arg1: i32) -> (i32, i32, i32) {
    %c0_i32 = arith.constant 0 : i32
    %c0_i32_0 = arith.constant 0 : i32
    %c0_i32_1 = arith.constant 0 : i32
    return %arg0, %c0_i32, %c0_i32_0 : i32, i32, i32
  }
}

</mosaic_0001>

<llo_original>
// kernel: tpu_custom_call.1
$region0: #{tpu_custom_call.1}
  #allocation0 [shape = 'u32[]', space=smem, size = 0x4, offset = 0x4, fixed_abs, tag = 'smem constant byte address 0x4 - core index']
  #allocation1 [shape = 'u32[144,128]{1,0:T(1,128)}', space=vmem, size = 0x12000, scoped, tag = 'internal scratch']
  #allocation2 [shape = 'f32[4,1,8]{2,1,0:T(1,128)}', space=vmem, size = 0x800, scoped, tag = 'scratch operand']
  %s0 = inlined_call_operand.hbm [shape: s32[4,1,8], index: 0, kind: input, shape index: {}]
  %s1 = inlined_call_operand.hbm [shape: bf16[4,8,32], index: 1, kind: input, shape index: {}]
  %s2 = inlined_call_operand.vmem [shape: bf16[1,32], index: 2, kind: input, shape index: {}]
  %s3 = inlined_call_operand.hbm [shape: f32[2,1,128], index: 3, kind: output, shape index: {}]
  %s4 = sld [smem:[#allocation0]]
  $region38: #{tpu_custom_call.1} parent=0
    _
  %s6 = ssub.s32 1, %s4
  %s7 = scalar_select 0, %s6, %s4
  $region1: #{tpu_custom_call.1} parent=0
    #allocation3 [shape = 'u8[2048]{0}', space=vmem, size = 0x800, scoped, tag = 'input window, operand 0, single buffered']
    #allocation4 [shape = 's32[1]{0}', space=sflag, size = 0x4, scoped, tag = 'scoped memory for tpu_custom_call.1']
    #allocation5 [shape = 's32[1]{0}', space=sflag, size = 0x4, scoped, tag = 'scoped memory for tpu_custom_call.1']
    #allocation6 [shape = 'u8[8192]{0}', space=vmem, size = 0x2000, scoped, tag = 'input window, operand 1, single buffered']
    #allocation7 [shape = 's32[1]{0}', space=sflag, size = 0x4, scoped, tag = 'scoped memory for tpu_custom_call.1']
    #allocation8 [shape = 'u8[1024]{0}', space=vmem, size = 0x400, scoped, tag = 'output window, operand 0, single buffered']
    %8 = vsyncpa [#allocation4], 0
    %9 = vsyncpa [#allocation7], 0
    %10 = vsyncpa [#allocation5], 0
    // Predicated region
    $region2: #{tpu_custom_call.1} parent=1 // pred_check
      _
    $region3: #{tpu_custom_call.1} parent=1 // pred_check_branch
      %12 = sbr.rel (0) target = $region5
    $region4: #{tpu_custom_call.1} parent=1 // pred_region
      %s14 = ssub.s32 64, 64
      %15 = vsyncadd [#allocation4], %s14
      %s16 = sshll.u32 [#allocation3], 4
      %s17 = int_to_ptr.vmem [resolvable:$true] %s16
      %22 = dma.hbm_to_vmem [thread:$0]  %s0, 64, %s17, [#allocation4], 16, 16, 1
    $region5: #{tpu_custom_call.1} parent=1 // pred_fallthru
      _
    // Predicated region
    $region6: #{tpu_custom_call.1} parent=1 // pred_check
      _
    $region7: #{tpu_custom_call.1} parent=1 // pred_check_branch
      %24 = sbr.rel (0) target = $region9
    $region8: #{tpu_custom_call.1} parent=1 // pred_region
      %s26 = ssub.s32 256, 256
      %27 = vsyncadd [#allocation7], %s26
      %s28 = sshll.u32 [#allocation6], 4
      %s29 = int_to_ptr.vmem [resolvable:$true] %s28
      %34 = dma.hbm_to_vmem [thread:$0]  %s1, 256, %s29, [#allocation7], 64, 64, 4
    $region9: #{tpu_custom_call.1} parent=1 // pred_fallthru
      _
    // Predicated region
    $region10: #{tpu_custom_call.1} parent=1 // pred_check
      _
    $region11: #{tpu_custom_call.1} parent=1 // pred_check_branch
      %36 = sbr.rel (0) target = $region13
    $region12: #{tpu_custom_call.1} parent=1 // pred_region
      _
    $region13: #{tpu_custom_call.1} parent=1 // pred_fallthru
      _
    // Predicated region
    $region14: #{tpu_custom_call.1} parent=1 // pred_check
      _
    $region15: #{tpu_custom_call.1} parent=1 // pred_check_branch
      %38 = sbr.rel (0) target = $region17
    $region16: #{tpu_custom_call.1} parent=1 // pred_region
      %39 = dma.done [#allocation4], 64
    $region17: #{tpu_custom_call.1} parent=1 // pred_fallthru
      _
    // Predicated region
    $region18: #{tpu_custom_call.1} parent=1 // pred_check
      _
    $region19: #{tpu_custom_call.1} parent=1 // pred_check_branch
      %41 = sbr.rel (0) target = $region21
    $region20: #{tpu_custom_call.1} parent=1 // pred_region
      %42 = dma.done [#allocation7], 256
    $region21: #{tpu_custom_call.1} parent=1 // pred_fallthru
      _
    %p44 = scmp.eq.s32.totalorder 0, 0
    // Predicated region
    $region22: #{tpu_custom_call.1} parent=1 // pred_check
      %p45 = pneg %p44
    $region23: #{tpu_custom_call.1} parent=1 // pred_check_branch
      %47 = sbr.rel (%p45) target = $region25
    $region24: #{tpu_custom_call.1} parent=1 // pred_region
      %vm48 = vcmask 57344
      %49 = vst.msk [vmem:[#allocation2] sm:$0x1] %vm48, 0.0
      %50 = vst.msk [vmem:[#allocation2 + $0x1] sm:$0x1] %vm48, 0.0
      %51 = vst.msk [vmem:[#allocation2 + $0x2] sm:$0x1] %vm48, 0.0
      %52 = vst.msk [vmem:[#allocation2 + $0x3] sm:$0x1] %vm48, 0.0
    $region25: #{tpu_custom_call.1} parent=1 // pred_fallthru
      _
    %v53 = vld [vmem:[%s2] sm:$0x1]
    %v54 = vld [vmem:[#allocation6] sm:$0xf]
    %vm55 = vcmask 261120
    %v57 = vsel %vm55, %v53, 0
    %v60 = vsel %vm55, %v54, 0
    %62 = vmatprep.subr.bf16.mxu0 0
    %63 = vmatpush1.bf16.xpose.msra.mxu0 0
    %64 = vmatprep.subr.bf16.mxu0 0
    %65 = vmatpush1.bf16.xpose.msra.mxu0 0
    %66 = vmatprep.subr.bf16.mxu0 0
    %67 = vmatpush1.bf16.xpose.msra.mxu0 0
    %68 = vmatprep.subr.bf16.mxu0 0
    %69 = vmatpush1.bf16.xpose.msra.mxu0 0
    %70 = vmatprep.subr.bf16.mxu0 0
    %71 = vmatpush1.bf16.xpose.msra.mxu0 0
    %72 = vmatprep.subr.bf16.mxu0 0
    %73 = vmatpush1.bf16.xpose.msra.mxu0 0
    %74 = vmatprep.subr.bf16.mxu0 0
    %75 = vmatpush1.bf16.xpose.msra.mxu0 0
    %76 = vmatprep.subr.bf16.mxu0 0
    %77 = vmatpush1.bf16.xpose.msra.mxu0 %v60
    %78 = vmatprep.subr.bf16.mxu0 0
    %79 = vmatpush2.bf16.xpose.msra.mxu0 0
    %80 = vmatprep.subr.bf16.mxu0 0
    %81 = vmatpush2.bf16.xpose.msra.mxu0 0
    %82 = vmatprep.subr.bf16.mxu0 0
    %83 = vmatpush2.bf16.xpose.msra.mxu0 0
    %84 = vmatprep.subr.bf16.mxu0 0
    %85 = vmatpush2.bf16.xpose.msra.mxu0 0
    %86 = vmatprep.subr.bf16.mxu0 0
    %87 = vmatpush2.bf16.xpose.msra.mxu0 0
    %88 = vmatprep.subr.bf16.mxu0 0
    %89 = vmatpush2.bf16.xpose.msra.mxu0 0
    %90 = vmatprep.subr.bf16.mxu0 0
    %91 = vmatpush2.bf16.xpose.msra.mxu0 0
    %92 = vmatprep.subr.bf16.mxu0 0
    %93 = vmatpush2.bf16.xpose.msra.mxu0 0
    %94 = vmatprep.mubr.bf16.mxu0 0
    %95 = vmatmul.mubr.bf16.gmra.mxu0 %v57
    %v96 = vpop.f32.mrf.mxu0
    %v97 = vadd.f32 0.0, %v96
    %v98 = vpop.f32.mrf.mxu0
    %v99 = vpop.f32.mrf.mxu0
    %v100 = vpop.f32.mrf.mxu0
    %101 = vdwg.mxu0
    %v102 = vld [vmem:[#allocation2] sm:$0x1]
    %v103 = vadd.f32 %v102, %v97
    %vm104 = vcmask 57344
    %105 = vst.msk [vmem:[#allocation2] sm:$0x1] %vm104, %v103
    %s106 = scalar_lea.vmem [#allocation6], 4
    %v107 = vld [vmem:[%s106] sm:$0xf]
    %v109 = vsel %vm55, %v107, 0
    %111 = vmatprep.subr.bf16.mxu0 0
    %112 = vmatpush1.bf16.xpose.msra.mxu0 0
    %113 = vmatprep.subr.bf16.mxu0 0
    %114 = vmatpush1.bf16.xpose.msra.mxu0 0
    %115 = vmatprep.subr.bf16.mxu0 0
    %116 = vmatpush1.bf16.xpose.msra.mxu0 0
    %117 = vmatprep.subr.bf16.mxu0 0
    %118 = vmatpush1.bf16.xpose.msra.mxu0 0
    %119 = vmatprep.subr.bf16.mxu0 0
    %120 = vmatpush1.bf16.xpose.msra.mxu0 0
    %121 = vmatprep.subr.bf16.mxu0 0
    %122 = vmatpush1.bf16.xpose.msra.mxu0 0
    %123 = vmatprep.subr.bf16.mxu0 0
    %124 = vmatpush1.bf16.xpose.msra.mxu0 0
    %125 = vmatprep.subr.bf16.mxu0 0
    %126 = vmatpush1.bf16.xpose.msra.mxu0 %v109
    %127 = vmatprep.subr.bf16.mxu0 0
    %128 = vmatpush2.bf16.xpose.msra.mxu0 0
    %129 = vmatprep.subr.bf16.mxu0 0
    %130 = vmatpush2.bf16.xpose.msra.mxu0 0
    %131 = vmatprep.subr.bf16.mxu0 0
    %132 = vmatpush2.bf16.xpose.msra.mxu0 0
    %133 = vmatprep.subr.bf16.mxu0 0
    %134 = vmatpush2.bf16.xpose.msra.mxu0 0
    %135 = vmatprep.subr.bf16.mxu0 0
    %136 = vmatpush2.bf16.xpose.msra.mxu0 0
    %137 = vmatprep.subr.bf16.mxu0 0
    %138 = vmatpush2.bf16.xpose.msra.mxu0 0
    %139 = vmatprep.subr.bf16.mxu0 0
    %140 = vmatpush2.bf16.xpose.msra.mxu0 0
    %141 = vmatprep.subr.bf16.mxu0 0
    %142 = vmatpush2.bf16.xpose.msra.mxu0 0
    %143 = vmatprep.mubr.bf16.mxu0 0
    %144 = vmatmul.mubr.bf16.gmra.mxu0 %v57
    %v145 = vpop.f32.mrf.mxu0
    %v146 = vadd.f32 0.0, %v145
    %v147 = vpop.f32.mrf.mxu0
    %v148 = vpop.f32.mrf.mxu0
    %v149 = vpop.f32.mrf.mxu0
    %150 = vdwg.mxu0
    %s151 = scalar_lea.vmem [#allocation2], 1
    %v152 = vld [vmem:[%s151] sm:$0x1]
    %v153 = vadd.f32 %v152, %v146
    %154 = vst.msk [vmem:[%s151] sm:$0x1] %vm104, %v153
    %s155 = scalar_lea.vmem [#allocation6], 8
    %v156 = vld [vmem:[%s155] sm:$0xf]
    %v158 = vsel %vm55, %v156, 0
    %160 = vmatprep.subr.bf16.mxu0 0
    %161 = vmatpush1.bf16.xpose.msra.mxu0 0
    %162 = vmatprep.subr.bf16.mxu0 0
    %163 = vmatpush1.bf16.xpose.msra.mxu0 0
    %164 = vmatprep.subr.bf16.mxu0 0
    %165 = vmatpush1.bf16.xpose.msra.mxu0 0
    %166 = vmatprep.subr.bf16.mxu0 0
    %167 = vmatpush1.bf16.xpose.msra.mxu0 0
    %168 = vmatprep.subr.bf16.mxu0 0
    %169 = vmatpush1.bf16.xpose.msra.mxu0 0
    %170 = vmatprep.subr.bf16.mxu0 0
    %171 = vmatpush1.bf16.xpose.msra.mxu0 0
    %172 = vmatprep.subr.bf16.mxu0 0
    %173 = vmatpush1.bf16.xpose.msra.mxu0 0
    %174 = vmatprep.subr.bf16.mxu0 0
    %175 = vmatpush1.bf16.xpose.msra.mxu0 %v158
    %176 = vmatprep.subr.bf16.mxu0 0
    %177 = vmatpush2.bf16.xpose.msra.mxu0 0
    %178 = vmatprep.subr.bf16.mxu0 0
    %179 = vmatpush2.bf16.xpose.msra.mxu0 0
    %180 = vmatprep.subr.bf16.mxu0 0
    %181 = vmatpush2.bf16.xpose.msra.mxu0 0
    %182 = vmatprep.subr.bf16.mxu0 0
    %183 = vmatpush2.bf16.xpose.msra.mxu0 0
    %184 = vmatprep.subr.bf16.mxu0 0
    %185 = vmatpush2.bf16.xpose.msra.mxu0 0
    %186 = vmatprep.subr.bf16.mxu0 0
    %187 = vmatpush2.bf16.xpose.msra.mxu0 0
    %188 = vmatprep.subr.bf16.mxu0 0
    %189 = vmatpush2.bf16.xpose.msra.mxu0 0
    %190 = vmatprep.subr.bf16.mxu0 0
    %191 = vmatpush2.bf16.xpose.msra.mxu0 0
    %192 = vmatprep.mubr.bf16.mxu0 0
    %193 = vmatmul.mubr.bf16.gmra.mxu0 %v57
    %v194 = vpop.f32.mrf.mxu0
    %v195 = vadd.f32 0.0, %v194
    %v196 = vpop.f32.mrf.mxu0
    %v197 = vpop.f32.mrf.mxu0
    %v198 = vpop.f32.mrf.mxu0
    %199 = vdwg.mxu0
    %s200 = scalar_lea.vmem [#allocation2], 2
    %v201 = vld [vmem:[%s200] sm:$0x1]
    %v202 = vadd.f32 %v201, %v195
    %203 = vst.msk [vmem:[%s200] sm:$0x1] %vm104, %v202
    %s204 = scalar_lea.vmem [#allocation6], 12
    %v205 = vld [vmem:[%s204] sm:$0xf]
    %v207 = vsel %vm55, %v205, 0
    %209 = vmatprep.subr.bf16.mxu0 0
    %210 = vmatpush1.bf16.xpose.msra.mxu0 0
    %211 = vmatprep.subr.bf16.mxu0 0
    %212 = vmatpush1.bf16.xpose.msra.mxu0 0
    %213 = vmatprep.subr.bf16.mxu0 0
    %214 = vmatpush1.bf16.xpose.msra.mxu0 0
    %215 = vmatprep.subr.bf16.mxu0 0
    %216 = vmatpush1.bf16.xpose.msra.mxu0 0
    %217 = vmatprep.subr.bf16.mxu0 0
    %218 = vmatpush1.bf16.xpose.msra.mxu0 0
    %219 = vmatprep.subr.bf16.mxu0 0
    %220 = vmatpush1.bf16.xpose.msra.mxu0 0
    %221 = vmatprep.subr.bf16.mxu0 0
    %222 = vmatpush1.bf16.xpose.msra.mxu0 0
    %223 = vmatprep.subr.bf16.mxu0 0
    %224 = vmatpush1.bf16.xpose.msra.mxu0 %v207
    %225 = vmatprep.subr.bf16.mxu0 0
    %226 = vmatpush2.bf16.xpose.msra.mxu0 0
    %227 = vmatprep.subr.bf16.mxu0 0
    %228 = vmatpush2.bf16.xpose.msra.mxu0 0
    %229 = vmatprep.subr.bf16.mxu0 0
    %230 = vmatpush2.bf16.xpose.msra.mxu0 0
    %231 = vmatprep.subr.bf16.mxu0 0
    %232 = vmatpush2.bf16.xpose.msra.mxu0 0
    %233 = vmatprep.subr.bf16.mxu0 0
    %234 = vmatpush2.bf16.xpose.msra.mxu0 0
    %235 = vmatprep.subr.bf16.mxu0 0
    %236 = vmatpush2.bf16.xpose.msra.mxu0 0
    %237 = vmatprep.subr.bf16.mxu0 0
    %238 = vmatpush2.bf16.xpose.msra.mxu0 0
    %239 = vmatprep.subr.bf16.mxu0 0
    %240 = vmatpush2.bf16.xpose.msra.mxu0 0
    %241 = vmatprep.mubr.bf16.mxu0 0
    %242 = vmatmul.mubr.bf16.gmra.mxu0 %v57
    %v243 = vpop.f32.mrf.mxu0
    %v244 = vadd.f32 0.0, %v243
    %v245 = vpop.f32.mrf.mxu0
    %v246 = vpop.f32.mrf.mxu0
    %v247 = vpop.f32.mrf.mxu0
    %248 = vdwg.mxu0
    %s249 = scalar_lea.vmem [#allocation2], 3
    %v250 = vld [vmem:[%s249] sm:$0x1]
    %v251 = vadd.f32 %v250, %v244
    %252 = vst.msk [vmem:[%s249] sm:$0x1] %vm104, %v251
    // Predicated region
    $region26: #{tpu_custom_call.1} parent=1 // pred_check
      %p253 = pneg %p44
    $region27: #{tpu_custom_call.1} parent=1 // pred_check_branch
      %255 = sbr.rel (%p253) target = $region29
    $region28: #{tpu_custom_call.1} parent=1 // pred_region
      %v256 = vlaneseq
      %v257 = vand.u32 %v256, 127
      %v258 = vld [vmem:[#allocation3] sm:$0x1]
      %s259 = scalar_lea.vmem [#allocation3], 1
      %v260 = vld [vmem:[%s259] sm:$0x1]
      %v261 = vld [vmem:[#allocation2] sm:$0x1]
      %v262 = vld [vmem:[%s151] sm:$0x1]
      %vm263 = vcmp.eq.s32.totalorder %v258, 0
      %v264 = vsel %vm263, %v257, 8
      %v265 = vsel %vm104, %v264, 2147483647
      %v266 = vand.u32 %v265, 65535
      %v267 = vshra.s32 %v265, 16
      %v268 = vcvt.s32.f32 %v266
      %v269 = vcvt.s32.f32 %v267
      %270 = vmin.xlane.f32.xlu0 %v269
      %v271 = vpop.xlane.xlu0 %270
      %vm272 = vcmp.eq.f32.partialorder %v269, %v271
      %v273 = vsel %vm272, %v268, inf
      %274 = vmin.xlane.f32.xlu0 %v273
      %v275 = vpop.xlane.xlu0 %274
      %v276 = vcvt.f32.s32 %v275
      %v277 = vcvt.f32.s32 %v271
      %v278 = vshll.u32 %v277, 16
      %v279 = vadd.s32 %v278, %v276
      %vm280 = vcmp.eq.s32.totalorder %v260, 0
      %v281 = vsel %vm280, %v257, 8
      %v282 = vsel %vm104, %v281, 2147483647
      %v283 = vand.u32 %v282, 65535
      %v284 = vshra.s32 %v282, 16
      %v285 = vcvt.s32.f32 %v283
      %v286 = vcvt.s32.f32 %v284
      %287 = vmin.xlane.f32.xlu0 %v286
      %v288 = vpop.xlane.xlu0 %287
      %vm289 = vcmp.eq.f32.partialorder %v286, %v288
      %v290 = vsel %vm289, %v285, inf
      %291 = vmin.xlane.f32.xlu0 %v290
      %v292 = vpop.xlane.xlu0 %291
      %v293 = vcvt.f32.s32 %v292
      %v294 = vcvt.f32.s32 %v288
      %v295 = vshll.u32 %v294, 16
      %v296 = vadd.s32 %v295, %v293
      %vm297 = vcmp.ne.s32.totalorder %v258, %v260
      %v298 = vsel %vm297, 1, 0
      %v299 = vsel %vm104, %v298, 0
      %v300 = vand.u32 %v299, 65535
      %v301 = vshrl.u32 %v299, 16
      %v302 = vcvt.s32.f32 %v300
      %v303 = vcvt.s32.f32 %v301
      %304 = vadd.xlane.f32.xlu0 %v302
      %v305 = vpop.xlane.xlu0 %304
      %306 = vadd.xlane.f32.xlu0 %v303
      %v307 = vpop.xlane.xlu0 %306
      %v308 = vcvt.f32.s32 %v305
      %v309 = vcvt.f32.s32 %v307
      %v310 = vshll.u32 %v309, 16
      %v311 = vadd.s32 %v310, %v308
      %vm312 = vcmp.gt.s32.totalorder %v311, 0
      %v313 = vsel %vm297, %v257, 8
      %v314 = vsel %vm104, %v313, 2147483647
      %v315 = vand.u32 %v314, 65535
      %v316 = vshra.s32 %v314, 16
      %v317 = vcvt.s32.f32 %v315
      %v318 = vcvt.s32.f32 %v316
      %319 = vmin.xlane.f32.xlu0 %v318
      %v320 = vpop.xlane.xlu0 %319
      %vm321 = vcmp.eq.f32.partialorder %v318, %v320
      %v322 = vsel %vm321, %v317, inf
      %323 = vmin.xlane.f32.xlu0 %v322
      %v324 = vpop.xlane.xlu0 %323
      %v325 = vcvt.f32.s32 %v324
      %v326 = vcvt.f32.s32 %v320
      %v327 = vshll.u32 %v326, 16
      %v328 = vadd.s32 %v327, %v325
      %vm329 = vcmp.gt.s32.totalorder %v279, %v296
      %v330 = vsel %vm329, %v279, %v296
      %v331 = vsel %vm312, %v330, 8
      %v332 = vsel %vm312, %v328, 7
      %v333 = vsel %vm312, %v296, %v279
      %vm334 = vcmp.ge.s32.totalorder %v257, %v332
      %vm335 = vcmp.lt.s32.totalorder %v257, %v331
      %vm336 = vmand %vm334, %vm335
      %v337 = vsub.f32 %v261, %v262
      %v338 = vsub.f32 0.0, %v337
      %v339 = vmax.f32 %v338, 0.0
      %v340 = vand.u32 2147483647, %v337
      %v341 = vsub.f32 0.0, %v340
      %v342 = vmul.f32 %v341, 1.442695
      %v343 = vpow.pop %v342
      %v344 = vadd.f32 %v343, 1.0
      %v345 = vlog2.pop %v344
      %v346 = vmul.f32 %v345, 0.6931472
      %v347 = vadd.f32 %v339, %v346
      %v348 = vsel %vm336, 1, 0
      %v349 = vcvt.s32.f32 %v348
      %v350 = vsel %vm104, %v349, 0.0
      %351 = vadd.xlane.f32.xlu0 %v350
      %v352 = vpop.xlane.xlu0 %351
      %v353 = vsel %vm336, %v347, 0.0
      %v354 = vsel %vm104, %v353, 0.0
      %355 = vadd.xlane.f32.xlu0 %v354
      %v356 = vpop.xlane.xlu0 %355
      %v357 = vmax.f32 %v352, 1.0
      %v358 = vrcp.pop %v357
      %v359 = vmul.f32 %v356, %v358
      %v360 = vsub.s32 %v279, 1
      %vm361 = vcmp.eq.s32.totalorder %v257, %v360
      %v362 = vsel %vm361, %v261, 0.0
      %v363 = vsel %vm104, %v362, 0.0
      %364 = vadd.xlane.f32.xlu0 %v363
      %v365 = vpop.xlane.xlu0 %364
      %v366 = vsub.s32 %v333, 1
      %vm367 = vcmp.eq.s32.totalorder %v257, %v366
      %v368 = vsel %vm367, %v262, 0.0
      %v369 = vsel %vm104, %v368, 0.0
      %370 = vadd.xlane.f32.xlu0 %v369
      %v371 = vpop.xlane.xlu0 %370
      %vm372 = vcmp.eq.s32.totalorder %v257, 0
      %vm373 = vcmp.eq.s32.totalorder %v257, 1
      %vm374 = vcmp.eq.s32.totalorder %v257, 2
      %v375 = vsel %vm374, %v371, 0.0
      %v376 = vsel %vm373, %v365, %v375
      %v377 = vsel %vm372, %v359, %v376
      %378 = vst [vmem:[#allocation8] sm:$0x1] %v377
      %s379 = scalar_lea.vmem [#allocation3], 2
      %v380 = vld [vmem:[%s379] sm:$0x1]
      %s381 = scalar_lea.vmem [#allocation3], 3
      %v382 = vld [vmem:[%s381] sm:$0x1]
      %v383 = vld [vmem:[%s200] sm:$0x1]
      %v384 = vld [vmem:[%s249] sm:$0x1]
      %vm385 = vcmp.eq.s32.totalorder %v380, 0
      %v386 = vsel %vm385, %v257, 8
      %v387 = vsel %vm104, %v386, 2147483647
      %v388 = vand.u32 %v387, 65535
      %v389 = vshra.s32 %v387, 16
      %v390 = vcvt.s32.f32 %v388
      %v391 = vcvt.s32.f32 %v389
      %392 = vmin.xlane.f32.xlu0 %v391
      %v393 = vpop.xlane.xlu0 %392
      %vm394 = vcmp.eq.f32.partialorder %v391, %v393
      %v395 = vsel %vm394, %v390, inf
      %396 = vmin.xlane.f32.xlu0 %v395
      %v397 = vpop.xlane.xlu0 %396
      %v398 = vcvt.f32.s32 %v397
      %v399 = vcvt.f32.s32 %v393
      %v400 = vshll.u32 %v399, 16
      %v401 = vadd.s32 %v400, %v398
      %vm402 = vcmp.eq.s32.totalorder %v382, 0
      %v403 = vsel %vm402, %v257, 8
      %v404 = vsel %vm104, %v403, 2147483647
      %v405 = vand.u32 %v404, 65535
      %v406 = vshra.s32 %v404, 16
      %v407 = vcvt.s32.f32 %v405
      %v408 = vcvt.s32.f32 %v406
      %409 = vmin.xlane.f32.xlu0 %v408
      %v410 = vpop.xlane.xlu0 %409
      %vm411 = vcmp.eq.f32.partialorder %v408, %v410
      %v412 = vsel %vm411, %v407, inf
      %413 = vmin.xlane.f32.xlu0 %v412
      %v414 = vpop.xlane.xlu0 %413
      %v415 = vcvt.f32.s32 %v414
      %v416 = vcvt.f32.s32 %v410
      %v417 = vshll.u32 %v416, 16
      %v418 = vadd.s32 %v417, %v415
      %vm419 = vcmp.ne.s32.totalorder %v380, %v382
      %v420 = vsel %vm419, 1, 0
      %v421 = vsel %vm104, %v420, 0
      %v422 = vand.u32 %v421, 65535
      %v423 = vshrl.u32 %v421, 16
      %v424 = vcvt.s32.f32 %v422
      %v425 = vcvt.s32.f32 %v423
      %426 = vadd.xlane.f32.xlu0 %v424
      %v427 = vpop.xlane.xlu0 %426
      %428 = vadd.xlane.f32.xlu0 %v425
      %v429 = vpop.xlane.xlu0 %428
      %v430 = vcvt.f32.s32 %v427
      %v431 = vcvt.f32.s32 %v429
      %v432 = vshll.u32 %v431, 16
      %v433 = vadd.s32 %v432, %v430
      %vm434 = vcmp.gt.s32.totalorder %v433, 0
      %v435 = vsel %vm419, %v257, 8
      %v436 = vsel %vm104, %v435, 2147483647
      %v437 = vand.u32 %v436, 65535
      %v438 = vshra.s32 %v436, 16
      %v439 = vcvt.s32.f32 %v437
      %v440 = vcvt.s32.f32 %v438
      %441 = vmin.xlane.f32.xlu0 %v440
      %v442 = vpop.xlane.xlu0 %441
      %vm443 = vcmp.eq.f32.partialorder %v440, %v442
      %v444 = vsel %vm443, %v439, inf
      %445 = vmin.xlane.f32.xlu0 %v444
      %v446 = vpop.xlane.xlu0 %445
      %v447 = vcvt.f32.s32 %v446
      %v448 = vcvt.f32.s32 %v442
      %v449 = vshll.u32 %v448, 16
      %v450 = vadd.s32 %v449, %v447
      %vm451 = vcmp.gt.s32.totalorder %v401, %v418
      %v452 = vsel %vm451, %v401, %v418
      %v453 = vsel %vm434, %v452, 8
      %v454 = vsel %vm434, %v450, 7
      %v455 = vsel %vm434, %v418, %v401
      %vm456 = vcmp.ge.s32.totalorder %v257, %v454
      %vm457 = vcmp.lt.s32.totalorder %v257, %v453
      %vm458 = vmand %vm456, %vm457
      %v459 = vsub.f32 %v383, %v384
      %v460 = vsub.f32 0.0, %v459
      %v461 = vmax.f32 %v460, 0.0
      %v462 = vand.u32 2147483647, %v459
      %v463 = vsub.f32 0.0, %v462
      %v464 = vmul.f32 %v463, 1.442695
      %v465 = vpow.pop %v464
      %v466 = vadd.f32 %v465, 1.0
      %v467 = vlog2.pop %v466
      %v468 = vmul.f32 %v467, 0.6931472
      %v469 = vadd.f32 %v461, %v468
      %v470 = vsel %vm458, 1, 0
      %v471 = vcvt.s32.f32 %v470
      %v472 = vsel %vm104, %v471, 0.0
      %473 = vadd.xlane.f32.xlu0 %v472
      %v474 = vpop.xlane.xlu0 %473
      %v475 = vsel %vm458, %v469, 0.0
      %v476 = vsel %vm104, %v475, 0.0
      %477 = vadd.xlane.f32.xlu0 %v476
      %v478 = vpop.xlane.xlu0 %477
      %v479 = vmax.f32 %v474, 1.0
      %v480 = vrcp.pop %v479
      %v481 = vmul.f32 %v478, %v480
      %v482 = vsub.s32 %v401, 1
      %vm483 = vcmp.eq.s32.totalorder %v257, %v482
      %v484 = vsel %vm483, %v383, 0.0
      %v485 = vsel %vm104, %v484, 0.0
      %486 = vadd.xlane.f32.xlu0 %v485
      %v487 = vpop.xlane.xlu0 %486
      %v488 = vsub.s32 %v455, 1
      %vm489 = vcmp.eq.s32.totalorder %v257, %v488
      %v490 = vsel %vm489, %v384, 0.0
      %v491 = vsel %vm104, %v490, 0.0
      %492 = vadd.xlane.f32.xlu0 %v491
      %v493 = vpop.xlane.xlu0 %492
      %v494 = vsel %vm374, %v493, 0.0
      %v495 = vsel %vm373, %v487, %v494
      %v496 = vsel %vm372, %v481, %v495
      %s497 = scalar_lea.vmem [#allocation8], 1
      %498 = vst [vmem:[%s497] sm:$0x1] %v496
    $region29: #{tpu_custom_call.1} parent=1 // pred_fallthru
      _
    // Predicated region
    $region30: #{tpu_custom_call.1} parent=1 // pred_check
      _
    $region31: #{tpu_custom_call.1} parent=1 // pred_check_branch
      %500 = sbr.rel (0) target = $region33
    $region32: #{tpu_custom_call.1} parent=1 // pred_region
      %s502 = ssub.s32 32, 32
      %503 = vsyncadd [#allocation5], %s502
      %s504 = sshll.u32 [#allocation8], 4
      %s505 = int_to_ptr.vmem [resolvable:$true] %s504
      %510 = dma.vmem_to_hbm [thread:$0]  %s505, 32, %s3, [#allocation5], 16, 16, 1
    $region33: #{tpu_custom_call.1} parent=1 // pred_fallthru
      _
    // Predicated region
    $region34: #{tpu_custom_call.1} parent=1 // pred_check
      _
    $region35: #{tpu_custom_call.1} parent=1 // pred_check_branch
      %512 = sbr.rel (0) target = $region37
    $region36: #{tpu_custom_call.1} parent=1 // pred_region
      %513 = dma.done [#allocation5], 32
    $region37: #{tpu_custom_call.1} parent=1 // pred_fallthru
      _
    %514 = vsyncpa [#allocation4], 1
    %515 = vsyncpa [#allocation7], 1
    %516 = vsyncpa [#allocation5], 1

</llo_original>
